<compile_context>
chip_gen: v7x
topology: tpu7x:2x2x1
jax: 0.10.0
libtpu: 0.0.40
codegen_flags: <defaults>
</compile_context>

<pallas_src>
import functools

import jax
import jax.numpy as jnp
from jax.experimental import pallas as pl
from jax.experimental.pallas import tpu as pltpu


@functools.lru_cache(maxsize=None)
def _build_sum_metric_update(num_systems: int, num_atoms: int):
    """Grid-less Pallas accumulator for a given static per-batch increment.

    State layout: (2,) int32 in SMEM = [total_num_systems, total_num_atoms].
    The increments are baked in as compile-time constants (they come from
    static shapes, never from tensor data).
    """

    def kernel(state_ref, out_ref):
        # state_ref / out_ref: (2,) int32 SMEM refs.
        out_ref[0] = state_ref[0] + num_systems
        out_ref[1] = state_ref[1] + num_atoms

    return pl.pallas_call(
        kernel,
        out_shape=jax.ShapeDtypeStruct((2,), jnp.int32),
        in_specs=[pl.BlockSpec(memory_space=pltpu.MemorySpace.SMEM)],
        out_specs=pl.BlockSpec(memory_space=pltpu.MemorySpace.SMEM),
        input_output_aliases={0: 0},  # accumulate into the existing state buffer
    )


def perf_metrics_init():
    """Fresh metric state: [total_num_systems, total_num_atoms] = zeros (int32)."""
    return jnp.zeros((2,), dtype=jnp.int32)


def perf_metrics_forward(state, y, atomic_numbers):
    """Functional equivalent of PerfMetrics.forward.

    Args:
      state:          (2,) int32 running totals (the two SumMetric states).
      y:              (num_systems, ...) per-system targets (only shape is used).
      atomic_numbers: (num_atoms,) per-atom ids (only shape is used).

    Returns:
      (new_state, metrics) where metrics holds *device* scalars (no host sync).
    """
    # Exactly like PyTorch, the increments are shape metadata, not tensor data.
    num_systems = int(y.shape[0])
    num_atoms = int(atomic_numbers.shape[0])

    new_state = _build_sum_metric_update(num_systems, num_atoms)(state)

    # NOTE: in a real training loop, prefer accumulating these trace-time
    # counts in the loop carry and touching device state only every N steps
    # (this op is pure launch overhead); kept per-batch here to mirror the
    # module's forward semantics.
    metrics = {
        "total_num_systems": new_state[0],
        "total_num_atoms": new_state[1],
    }
    return new_state, metrics


if __name__ == "__main__":
    key = jax.random.PRNGKey(0)
    k1, k2, k3, k4 = jax.random.split(key, 4)

    # Batch 1: 2 systems, 16 atoms (deterministic synthetic "Batch" fields).
    y1 = jax.random.normal(k1, (2,), dtype=jnp.float32)
    atomic_numbers1 = jax.random.randint(k2, (16,), 1, 119, dtype=jnp.int32)
    # Batch 2: 3 systems, 24 atoms.
    y2 = jax.random.normal(k3, (3,), dtype=jnp.float32)
    atomic_numbers2 = jax.random.randint(k4, (24,), 1, 119, dtype=jnp.int32)

    state = perf_metrics_init()
    state, metrics = perf_metrics_forward(state, y1, atomic_numbers1)
    state, metrics = perf_metrics_forward(state, y2, atomic_numbers2)

    # Single host sync at read/logging time (not per step).
    state = jax.block_until_ready(state)
    metrics = jax.block_until_ready(metrics)

    # Reference: plain Python accumulation of the same shape-derived counts.
    expected_systems = y1.shape[0] + y2.shape[0]                              # 5
    expected_atoms = atomic_numbers1.shape[0] + atomic_numbers2.shape[0]      # 40

    assert state.shape == (2,) and state.dtype == jnp.int32
    assert int(metrics["total_num_systems"]) == expected_systems, metrics
    assert int(metrics["total_num_atoms"]) == expected_atoms, metrics
    assert int(state[0]) == expected_systems
    assert int(state[1]) == expected_atoms

    print("KERNEL_OK")
</pallas_src>

<mosaic_0001>
module attributes {stable_mosaic.version = 11 : i64} {
  func.func @kernel(%arg0: memref<2xi32, #tpu.memory_space<smem>>, %arg1: memref<2xi32, #tpu.memory_space<smem>>) attributes {dimension_semantics = [], scalar_prefetch = 0 : i64, scratch_operands = 0 : i64, tpu.core_type = #tpu.core_type<tc>} {
    %c0 = arith.constant 0 : index
    %0 = memref.load %arg0[%c0] : memref<2xi32, #tpu.memory_space<smem>>
    %c2_i32 = arith.constant 2 : i32
    %1 = arith.addi %0, %c2_i32 : i32
    %c0_0 = arith.constant 0 : index
    %2 = memref.load %arg1[%c0_0] : memref<2xi32, #tpu.memory_space<smem>>
    memref.store %1, %arg1[%c0_0] : memref<2xi32, #tpu.memory_space<smem>>
    %c1 = arith.constant 1 : index
    %3 = memref.load %arg0[%c1] : memref<2xi32, #tpu.memory_space<smem>>
    %c16_i32 = arith.constant 16 : i32
    %4 = arith.addi %3, %c16_i32 : i32
    %c1_1 = arith.constant 1 : index
    %5 = memref.load %arg1[%c1_1] : memref<2xi32, #tpu.memory_space<smem>>
    memref.store %4, %arg1[%c1_1] : memref<2xi32, #tpu.memory_space<smem>>
    return
  }
}

</mosaic_0001>

<llo_original>
// kernel: tpu_custom_call.1
$region0: #{tpu_custom_call.1}
  #allocation0 [shape = 'u32[]', space=smem, size = 0x4, offset = 0x4, fixed_abs, tag = 'smem constant byte address 0x4 - core index']
  #allocation1 [shape = 'u32[144,128]{1,0:T(1,128)}', space=vmem, size = 0x12000, scoped, tag = 'internal scratch']
  %s0 = inlined_call_operand.hbm [shape: s32[2], index: 0, kind: input, shape index: {}, may-alias: {0,1}]
  %s1 = inlined_call_operand.hbm [shape: s32[2], index: 1, kind: output, shape index: {}, may-alias: {0,1}]
  %s2 = sld [smem:[#allocation0]]
  $region18: #{tpu_custom_call.1} parent=0
    _
  %s4 = ssub.s32 1, %s2
  %s5 = scalar_select 0, %s4, %s2
  $region1: #{tpu_custom_call.1} parent=0
    #allocation2 [shape = 'u8[512]{0}', space=smem, size = 0x200, scoped, tag = 'input window, operand 0, single buffered']
    #allocation3 [shape = 's32[1]{0}', space=sflag, size = 0x4, scoped, tag = 'scoped memory for tpu_custom_call.1']
    #allocation4 [shape = 's32[1]{0}', space=sflag, size = 0x4, scoped, tag = 'scoped memory for tpu_custom_call.1']
    #allocation5 [shape = 'u8[512]{0}', space=smem, size = 0x200, scoped, tag = 'output window, operand 0, single buffered']
    %6 = vsyncpa [#allocation3], 0
    %7 = vsyncpa [#allocation4], 0
    // Predicated region
    $region2: #{tpu_custom_call.1} parent=1 // pred_check
      _
    $region3: #{tpu_custom_call.1} parent=1 // pred_check_branch
      %9 = sbr.rel (0) target = $region5
    $region4: #{tpu_custom_call.1} parent=1 // pred_region
      %s11 = ssub.s32 16, 16
      %12 = vsyncadd [#allocation3], %s11
      %15 = dma.hbm_to_smem %s0, 16, [#allocation2], [#allocation3]
    $region5: #{tpu_custom_call.1} parent=1 // pred_fallthru
      _
    // Predicated region
    $region6: #{tpu_custom_call.1} parent=1 // pred_check
      _
    $region7: #{tpu_custom_call.1} parent=1 // pred_check_branch
      %17 = sbr.rel (0) target = $region9
    $region8: #{tpu_custom_call.1} parent=1 // pred_region
      %18 = dma.done [#allocation3], 16
    $region9: #{tpu_custom_call.1} parent=1 // pred_fallthru
      _
    %19 = sfence
    %s20 = sld [smem:[#allocation2]]
    %s21 = sadd.s32 %s20, 2
    %s22 = scalar_lea.smem [#allocation5], 0
    %23 = sst [smem:[%s22]] %s21
    %s24 = sld [smem:[#allocation2 + $0x1]]
    %s25 = sadd.s32 %s24, 16
    %s26 = scalar_lea.smem [#allocation5], 1
    %27 = sst [smem:[%s26]] %s25
    // Predicated region
    $region10: #{tpu_custom_call.1} parent=1 // pred_check
      _
    $region11: #{tpu_custom_call.1} parent=1 // pred_check_branch
      %29 = sbr.rel (0) target = $region13
    $region12: #{tpu_custom_call.1} parent=1 // pred_region
      %s31 = ssub.s32 16, 16
      %32 = vsyncadd [#allocation4], %s31
      %35 = dma.smem_to_hbm [#allocation5], 16, %s1, [#allocation4]
    $region13: #{tpu_custom_call.1} parent=1 // pred_fallthru
      _
    // Predicated region
    $region14: #{tpu_custom_call.1} parent=1 // pred_check
      _
    $region15: #{tpu_custom_call.1} parent=1 // pred_check_branch
      %37 = sbr.rel (0) target = $region17
    $region16: #{tpu_custom_call.1} parent=1 // pred_region
      %38 = dma.done [#allocation4], 16
    $region17: #{tpu_custom_call.1} parent=1 // pred_fallthru
      _
    %39 = sfence
    %40 = vsyncpa [#allocation3], 1
    %41 = vsyncpa [#allocation4], 1

</llo_original>
